<compile_context>
chip_gen: v7x
topology: tpu7x:2x2x1
jax: 0.10.0
libtpu: 0.0.40
codegen_flags: <defaults>
</compile_context>

<pallas_src>
import math

import jax
import jax.numpy as jnp
from jax.experimental import pallas as pl
from jax.experimental.pallas import tpu as pltpu


# ----------------------------- Pallas kernels ------------------------------ #

def _matmul_lrelu_kernel(p_ref, w_ref, o_ref):
    # o = LeakyReLU_0.2( patches @ W )   (bf16 inputs, f32 accumulate)
    y = jnp.dot(p_ref[...], w_ref[...], preferred_element_type=jnp.float32)
    o_ref[...] = jnp.where(y > 0, y, 0.2 * y).astype(o_ref.dtype)


def _matmul_stats_kernel(p_ref, w_ref, y_ref, sum_ref, sq_ref):
    # Pass 1 of the BN block: y = patches @ W, plus per-channel
    # sum / sum-of-squares accumulated across the M grid axis.
    # The sum/sq output blocks map to the same (0, 0) block for every grid
    # step, so they stay VMEM-resident (accumulator pattern).  Stats are
    # computed from the f32 accumulator; y is stored back in bf16 only.
    i = pl.program_id(0)

    @pl.when(i == 0)
    def _():
        sum_ref[...] = jnp.zeros_like(sum_ref)
        sq_ref[...] = jnp.zeros_like(sq_ref)

    y = jnp.dot(p_ref[...], w_ref[...], preferred_element_type=jnp.float32)
    y_ref[...] = y.astype(y_ref.dtype)
    sum_ref[...] += jnp.sum(y, axis=0, keepdims=True)
    sq_ref[...] += jnp.sum(y * y, axis=0, keepdims=True)


def _affine_lrelu_kernel(y_ref, a_ref, b_ref, o_ref):
    # Pass 2 of the BN block: o = LeakyReLU_0.2( y * a + b )
    # where a = gamma * rsqrt(var + eps), b = beta - mean * a (computed from
    # the pass-1 statistics in tiny host-side JAX).
    y = y_ref[...].astype(jnp.float32) * a_ref[...] + b_ref[...]
    o_ref[...] = jnp.where(y > 0, y, 0.2 * y).astype(o_ref.dtype)


def _matmul_sigmoid_kernel(p_ref, w_ref, o_ref):
    # o = sigmoid( patches @ W )
    y = jnp.dot(p_ref[...], w_ref[...], preferred_element_type=jnp.float32)
    o_ref[...] = 1.0 / (1.0 + jnp.exp(-y))


# --------------------------- pallas_call wrappers --------------------------- #

def _round_up(x, m):
    return (x + m - 1) // m * m


def _pick_tiling(m_rows, k_dim, cout_pad, out_bytes=2,
                 budget_bytes=24 << 20, max_tile=512):
    """Choose (padded M, TILE_M).  TILE_M is a multiple of 16 (bf16 sublanes),
    capped at 512 rows, and shrunk until the double-buffered patch tile +
    weight + output tile fit comfortably inside the default scoped-VMEM limit
    on every TPU generation (incl. v7x's 64 MiB physical VMEM)."""
    def vmem_est(t):
        return (2 * t * k_dim * 2            # patches, double-buffered, bf16
                + 2 * k_dim * cout_pad * 2   # weight buffers, bf16
                + 2 * t * cout_pad * out_bytes)  # output, double-buffered

    tile = min(max_tile, _round_up(m_rows, 16))
    tile = max(16, _round_up(tile, 16))
    while tile > 16 and vmem_est(tile) > budget_bytes:
        tile -= 16
    return _round_up(m_rows, tile), tile


def _run_matmul_lrelu(patches, wmat, tile_m):
    mp, k = patches.shape
    cp = wmat.shape[1]
    return pl.pallas_call(
        _matmul_lrelu_kernel,
        grid=(mp // tile_m,),
        in_specs=[
            pl.BlockSpec((tile_m, k), lambda i: (i, 0)),
            pl.BlockSpec((k, cp), lambda i: (0, 0)),
        ],
        out_specs=pl.BlockSpec((tile_m, cp), lambda i: (i, 0)),
        out_shape=jax.ShapeDtypeStruct((mp, cp), jnp.bfloat16),
        compiler_params=pltpu.CompilerParams(
            dimension_semantics=("parallel",)),
    )(patches, wmat)


def _run_matmul_stats(patches, wmat, tile_m):
    mp, k = patches.shape
    cp = wmat.shape[1]
    return pl.pallas_call(
        _matmul_stats_kernel,
        grid=(mp // tile_m,),
        in_specs=[
            pl.BlockSpec((tile_m, k), lambda i: (i, 0)),
            pl.BlockSpec((k, cp), lambda i: (0, 0)),
        ],
        out_specs=[
            pl.BlockSpec((tile_m, cp), lambda i: (i, 0)),
            pl.BlockSpec((1, cp), lambda i: (0, 0)),
            pl.BlockSpec((1, cp), lambda i: (0, 0)),
        ],
        out_shape=(
            jax.ShapeDtypeStruct((mp, cp), jnp.bfloat16),   # bf16 intermediate
            jax.ShapeDtypeStruct((1, cp), jnp.float32),
            jax.ShapeDtypeStruct((1, cp), jnp.float32),
        ),
        compiler_params=pltpu.CompilerParams(
            dimension_semantics=("arbitrary",)),  # accumulator over M
    )(patches, wmat)


def _run_affine_lrelu(y, a, b, tile_m):
    mp, cp = y.shape
    return pl.pallas_call(
        _affine_lrelu_kernel,
        grid=(mp // tile_m,),
        in_specs=[
            pl.BlockSpec((tile_m, cp), lambda i: (i, 0)),
            pl.BlockSpec((1, cp), lambda i: (0, 0)),
            pl.BlockSpec((1, cp), lambda i: (0, 0)),
        ],
        out_specs=pl.BlockSpec((tile_m, cp), lambda i: (i, 0)),
        out_shape=jax.ShapeDtypeStruct((mp, cp), jnp.bfloat16),
        compiler_params=pltpu.CompilerParams(
            dimension_semantics=("parallel",)),
    )(y, a, b)


def _run_matmul_sigmoid(patches, wmat, tile_m):
    mp, k = patches.shape
    cp = wmat.shape[1]
    return pl.pallas_call(
        _matmul_sigmoid_kernel,
        grid=(mp // tile_m,),
        in_specs=[
            pl.BlockSpec((tile_m, k), lambda i: (i, 0)),
            pl.BlockSpec((k, cp), lambda i: (0, 0)),
        ],
        out_specs=pl.BlockSpec((tile_m, cp), lambda i: (i, 0)),
        out_shape=jax.ShapeDtypeStruct((mp, cp), jnp.float32),
        compiler_params=pltpu.CompilerParams(
            dimension_semantics=("parallel",)),
    )(patches, wmat)


# ------------------------------- JAX glue ---------------------------------- #

def _im2col(x_nhwc, k, stride, pad):
    """Extract conv patches.  Returns (N*OH*OW, k*k*C), N, OH, OW, M."""
    n, h, w, c = x_nhwc.shape
    if pad:
        x_nhwc = jnp.pad(x_nhwc, ((0, 0), (pad, pad), (pad, pad), (0, 0)))
    oh = (h + 2 * pad - k) // stride + 1
    ow = (w + 2 * pad - k) // stride + 1
    cols = []
    for kh in range(k):
        for kw in range(k):
            cols.append(x_nhwc[:, kh:kh + stride * oh:stride,
                               kw:kw + stride * ow:stride, :])
    patches = jnp.stack(cols, axis=3)               # (N, OH, OW, k*k, C)
    m = n * oh * ow
    return patches.reshape(m, k * k * c), n, oh, ow, m


def _pad_rows(mat, m_pad):
    m = mat.shape[0]
    if m_pad != m:
        mat = jnp.pad(mat, ((0, m_pad - m), (0, 0)))
    return mat


def _prep_weight(w_oihw):
    """(O, Cin, KH, KW) -> bf16 (KH*KW*Cin, Cout_pad) with Cout padded to 128
    so the kernel output last-dim is lane-dense (unmasked vst)."""
    o, c, kh, kw = w_oihw.shape
    wmat = jnp.transpose(w_oihw, (2, 3, 1, 0)).reshape(kh * kw * c, o)
    cout_pad = _round_up(o, 128)
    if cout_pad != o:
        wmat = jnp.pad(wmat, ((0, 0), (0, cout_pad - o)))
    return wmat.astype(jnp.bfloat16), o, cout_pad


def _pad_channels(v, cout_pad):
    c = v.shape[-1]
    if cout_pad != c:
        v = jnp.pad(v, ((0, 0), (0, cout_pad - c)))
    return v


class DCGANCriticPallas:
    """Pallas re-implementation of DCGANCritic (fresh init, training-mode BN,
    bias=False convs as in the reference)."""

    def __init__(self, image_size, channels, ngf=64, key=None):
        self.image_size = image_size
        self.channels = channels
        self.ngf = ngf
        self.n_blocks = int(math.log2(image_size)) - 1

        key = jax.random.PRNGKey(0) if key is None else key
        keys = jax.random.split(key, self.n_blocks)

        self.params = []
        # Block 0: Conv(channels -> ngf, 4, 2, 1, bias=False) + LeakyReLU
        w0 = 0.05 * jax.random.normal(keys[0], (ngf, channels, 4, 4), jnp.float32)
        wmat, cout, cp = _prep_weight(w0)
        self.params.append({"wmat": wmat, "cout": cout, "cout_pad": cp})
        # Middle blocks: Conv + BatchNorm2d + LeakyReLU
        for i in range(1, self.n_blocks - 1):
            cin = ngf * 2 ** (i - 1)
            co = ngf * 2 ** i
            w = 0.05 * jax.random.normal(keys[i], (co, cin, 4, 4), jnp.float32)
            wmat, cout, cp = _prep_weight(w)
            self.params.append({
                "wmat": wmat, "cout": cout, "cout_pad": cp,
                "gamma": _pad_channels(jnp.ones((1, co), jnp.float32), cp),
                "beta": _pad_channels(jnp.zeros((1, co), jnp.float32), cp),
            })
        # Last block: Conv(-> 1, 4, 1, 0, bias=False) + Sigmoid
        cin_last = ngf * 2 ** (self.n_blocks - 2)
        wl = 0.05 * jax.random.normal(keys[-1], (1, cin_last, 4, 4), jnp.float32)
        wmat, cout, cp = _prep_weight(wl)
        self.params.append({"wmat": wmat, "cout": cout, "cout_pad": cp})

    def __call__(self, x_nchw):
        # NCHW -> NHWC, bf16 activations (f32 accumulate inside the kernels).
        x = jnp.transpose(x_nchw, (0, 2, 3, 1)).astype(jnp.bfloat16)

        # Block 0: conv s=2 p=1 + LeakyReLU
        prm = self.params[0]
        patches, n, oh, ow, m = _im2col(x, 4, 2, 1)
        m_pad, tile_m = _pick_tiling(m, patches.shape[1], prm["cout_pad"])
        y = _run_matmul_lrelu(_pad_rows(patches, m_pad), prm["wmat"], tile_m)
        x = y[:m, :prm["cout"]].reshape(n, oh, ow, prm["cout"])

        # Middle blocks: conv s=2 p=1 + BN(training batch stats) + LeakyReLU
        for i in range(1, self.n_blocks - 1):
            prm = self.params[i]
            patches, n, oh, ow, m = _im2col(x, 4, 2, 1)
            m_pad, tile_m = _pick_tiling(m, patches.shape[1], prm["cout_pad"])
            # Pass 1: matmul + per-channel sum / sum-of-squares (exact f32
            # stats from the MXU accumulator; y written back as bf16).
            # Zero-padded rows contribute 0 to both sums, so dividing by the
            # true M is exact.
            y, s, sq = _run_matmul_stats(_pad_rows(patches, m_pad),
                                         prm["wmat"], tile_m)
            mean = s / m
            var = jnp.maximum(sq / m - mean * mean, 0.0)   # biased var
            inv_std = jax.lax.rsqrt(var + 1e-5)
            a = prm["gamma"] * inv_std
            b = prm["beta"] - mean * a
            # Pass 2: fused affine BN + LeakyReLU, tiled and parallel over M.
            out = _run_affine_lrelu(y, a, b, tile_m)
            x = out[:m, :prm["cout"]].reshape(n, oh, ow, prm["cout"])

        # Last block: conv k=4 s=1 p=0 + Sigmoid (Cout padded to 128 lanes).
        prm = self.params[-1]
        patches, n, oh, ow, m = _im2col(x, 4, 1, 0)
        m_pad, tile_m = _pick_tiling(m, patches.shape[1], prm["cout_pad"],
                                     out_bytes=4)
        y = _run_matmul_sigmoid(_pad_rows(patches, m_pad), prm["wmat"], tile_m)
        out = y[:m, :1].reshape(n, oh, ow, 1)

        # NHWC -> NCHW then squeeze (matches torch.squeeze on (N,1,1,1) -> (N,))
        out = jnp.transpose(out, (0, 3, 1, 2))
        return jnp.squeeze(out)


if __name__ == "__main__":
    # Small shapes consistent with the module: batch=2, channels=4,
    # image_size=16 (-> n_blocks=3), ngf=8.
    batch, channels, image_size, ngf = 2, 4, 16, 8

    model = DCGANCriticPallas(image_size=image_size, channels=channels,
                              ngf=ngf, key=jax.random.PRNGKey(42))

    x = jax.random.normal(jax.random.PRNGKey(0),
                          (batch, channels, image_size, image_size),
                          jnp.float32)

    out = model(x)
    out = jax.block_until_ready(out)
    assert out.shape == (batch,), out.shape
    assert bool(jnp.all((out >= 0.0) & (out <= 1.0)))
    print("KERNEL_OK")
</pallas_src>

<mosaic_0001>
module attributes {stable_mosaic.version = 11 : i64} {
  func.func @_matmul_lrelu_kernel(%arg0: i32, %arg1: memref<128x64xbf16, #tpu.memory_space<vmem>>, %arg2: memref<64x128xbf16, #tpu.memory_space<vmem>>, %arg3: memref<128x128xbf16, #tpu.memory_space<vmem>>) attributes {dimension_semantics = [#tpu.dimension_semantics<parallel>], iteration_bounds = array<i64: 1>, scalar_prefetch = 0 : i64, scratch_operands = 0 : i64, tpu.core_type = #tpu.core_type<tc>, window_params = [{transform_indices = @transform_0, window_bounds = array<i64: 128, 64>}, {pipeline_mode = #tpu.pipeline_mode<synchronous>, transform_indices = @transform_1, window_bounds = array<i64: 64, 128>}, {transform_indices = @transform_2, window_bounds = array<i64: 128, 128>}]} {
    %c0 = arith.constant 0 : index
    %c0_0 = arith.constant 0 : index
    %0 = vector.load %arg1[%c0, %c0_0] : memref<128x64xbf16, #tpu.memory_space<vmem>>, vector<128x64xbf16>
    %c0_1 = arith.constant 0 : index
    %c0_2 = arith.constant 0 : index
    %1 = vector.load %arg2[%c0_1, %c0_2] : memref<64x128xbf16, #tpu.memory_space<vmem>>, vector<64x128xbf16>
    %cst = arith.constant dense<0.000000e+00> : vector<128x128xf32>
    %2 = tpu.matmul %0, %1, %cst {dimension_numbers = #tpu.dot_dimension_numbers<[1], [0], [0], [1], [0, 0, 1, 1], [], []>} : vector<128x64xbf16>, vector<64x128xbf16>, vector<128x128xf32> -> vector<128x128xf32>
    %cst_3 = arith.constant 0.000000e+00 : f32
    %3 = vector.broadcast %cst_3 : f32 to vector<128x128xf32>
    %4 = arith.cmpf ogt, %2, %3 : vector<128x128xf32>
    %cst_4 = arith.constant 2.000000e-01 : f32
    %5 = vector.broadcast %cst_4 : f32 to vector<128x128xf32>
    %6 = arith.mulf %5, %2 : vector<128x128xf32>
    %7 = arith.select %4, %2, %6 : vector<128x128xi1>, vector<128x128xf32>
    %8 = arith.truncf %7 : vector<128x128xf32> to vector<128x128xbf16>
    %c0_5 = arith.constant 0 : index
    %c0_6 = arith.constant 0 : index
    %9 = vector.load %arg3[%c0_5, %c0_6] : memref<128x128xbf16, #tpu.memory_space<vmem>>, vector<128x128xbf16>
    tpu.vector_store %arg3[%c0_5, %c0_6], %8 {strides = array<i32>} : memref<128x128xbf16, #tpu.memory_space<vmem>>, vector<128x128xbf16>,
    return
  }
  func.func @transform_0(%arg0: i32) -> (i32, i32) {
    %c0_i32 = arith.constant 0 : i32
    %c0_i32_0 = arith.constant 0 : i32
    return %arg0, %c0_i32 : i32, i32
  }
  func.func @transform_1(%arg0: i32) -> (i32, i32) {
    %c0_i32 = arith.constant 0 : i32
    %c0_i32_0 = arith.constant 0 : i32
    %c0_i32_1 = arith.constant 0 : i32
    return %c0_i32, %c0_i32_0 : i32, i32
  }
  func.func @transform_2(%arg0: i32) -> (i32, i32) {
    %c0_i32 = arith.constant 0 : i32
    %c0_i32_0 = arith.constant 0 : i32
    return %arg0, %c0_i32 : i32, i32
  }
}

</mosaic_0001>

<llo_original>
// kernel: tpu_custom_call.1
$region0: #{tpu_custom_call.1}
  #allocation0 [shape = 'u32[]', space=smem, size = 0x4, offset = 0x4, fixed_abs, tag = 'smem constant byte address 0x4 - core index']
  #allocation1 [shape = 'u32[144,128]{1,0:T(1,128)}', space=vmem, size = 0x12000, scoped, tag = 'internal scratch']
  %s0 = inlined_call_operand.vmem [shape: bf16[128,64], index: 0, kind: input, shape index: {}]
  %s1 = inlined_call_operand.vmem [shape: bf16[64,128], index: 1, kind: input, shape index: {}]
  %s2 = inlined_call_operand.hbm [shape: bf16[128,128], index: 2, kind: output, shape index: {}]
  %s3 = sld [smem:[#allocation0]]
  $region18: #{tpu_custom_call.1} parent=0
    _
  %s5 = ssub.s32 1, %s3
  %s6 = scalar_select 0, %s5, %s3
  $region1: #{tpu_custom_call.1} parent=0
    #allocation2 [shape = 'u8[32768]{0}', space=vmem, size = 0x8000, scoped, tag = 'output window, operand 0, single buffered']
    #allocation3 [shape = 's32[1]{0}', space=sflag, size = 0x4, scoped, tag = 'scoped memory for tpu_custom_call.1']
    %7 = vsyncpa [#allocation3], 0
    // Predicated region
    $region2: #{tpu_custom_call.1} parent=1 // pred_check
      _
    $region3: #{tpu_custom_call.1} parent=1 // pred_check_branch
      %9 = sbr.rel (0) target = $region5
    $region4: #{tpu_custom_call.1} parent=1 // pred_region
      _
    $region5: #{tpu_custom_call.1} parent=1 // pred_fallthru
      _
    // Predicated region
    $region6: #{tpu_custom_call.1} parent=1 // pred_check
      _
    $region7: #{tpu_custom_call.1} parent=1 // pred_check_branch
      %11 = sbr.rel (0) target = $region9
    $region8: #{tpu_custom_call.1} parent=1 // pred_region
      _
    $region9: #{tpu_custom_call.1} parent=1 // pred_fallthru
      _
    %v13 = vld [vmem:[%s0] sm:$0xf]
    %v14 = vld [vmem:[%s0 + $0x4] sm:$0xf]
    %v15 = vld [vmem:[%s0 + $0x8] sm:$0xf]
    %v16 = vld [vmem:[%s0 + $0xc] sm:$0xf]
    %v17 = vld [vmem:[%s0 + $0x10] sm:$0xf]
    %v18 = vld [vmem:[%s0 + $0x14] sm:$0xf]
    %v19 = vld [vmem:[%s0 + $0x18] sm:$0xf]
    %v20 = vld [vmem:[%s0 + $0x1c] sm:$0xf]
    %v21 = vld [vmem:[%s0 + $0x20] sm:$0xf]
    %v22 = vld [vmem:[%s0 + $0x24] sm:$0xf]
    %v23 = vld [vmem:[%s0 + $0x28] sm:$0xf]
    %v24 = vld [vmem:[%s0 + $0x2c] sm:$0xf]
    %v25 = vld [vmem:[%s0 + $0x30] sm:$0xf]
    %v26 = vld [vmem:[%s0 + $0x34] sm:$0xf]
    %v27 = vld [vmem:[%s0 + $0x38] sm:$0xf]
    %v28 = vld [vmem:[%s0 + $0x3c] sm:$0xf]
    %v29 = vld [vmem:[%s1] sm:$0xf]
    %v30 = vld [vmem:[%s1 + $0x4] sm:$0xf]
    %v31 = vld [vmem:[%s1 + $0x8] sm:$0xf]
    %v32 = vld [vmem:[%s1 + $0xc] sm:$0xf]
    %v33 = vld [vmem:[%s1 + $0x10] sm:$0xf]
    %v34 = vld [vmem:[%s1 + $0x14] sm:$0xf]
    %v35 = vld [vmem:[%s1 + $0x18] sm:$0xf]
    %v36 = vld [vmem:[%s1 + $0x1c] sm:$0xf]
    %v53 = vunpack.c.l.b16 %v13
    %v54 = vunpack.c.l.b16 %v14
    %v55 = vunpack.c.l.b16 %v15
    %v56 = vunpack.c.l.b16 %v16
    %v57 = vunpack.c.l.b16 %v17
    %v58 = vunpack.c.l.b16 %v18
    %v59 = vunpack.c.l.b16 %v19
    %v60 = vunpack.c.l.b16 %v20
    %v61 = vunpack.c.l.b16 %v21
    %v62 = vunpack.c.l.b16 %v22
    %v63 = vunpack.c.l.b16 %v23
    %v64 = vunpack.c.l.b16 %v24
    %v65 = vunpack.c.l.b16 %v25
    %v66 = vunpack.c.l.b16 %v26
    %v67 = vunpack.c.l.b16 %v27
    %v68 = vunpack.c.l.b16 %v28
    %v69 = vpack.c.b16 %v54, %v53
    %v70 = vpack.c.b16 %v56, %v55
    %v71 = vpack.c.b16 %v58, %v57
    %v72 = vpack.c.b16 %v60, %v59
    %v73 = vpack.c.b16 %v62, %v61
    %v74 = vpack.c.b16 %v64, %v63
    %v75 = vpack.c.b16 %v66, %v65
    %v76 = vpack.c.b16 %v68, %v67
    %v85 = vunpack.c.l.b16 %v29
    %v86 = vunpack.c.l.b16 %v30
    %v87 = vunpack.c.l.b16 %v31
    %v88 = vunpack.c.l.b16 %v32
    %v89 = vunpack.c.l.b16 %v33
    %v90 = vunpack.c.l.b16 %v34
    %v91 = vunpack.c.l.b16 %v35
    %v92 = vunpack.c.l.b16 %v36
    %v93 = vpack.c.b16 %v86, %v85
    %v94 = vpack.c.b16 %v88, %v87
    %v95 = vpack.c.b16 %v90, %v89
    %v96 = vpack.c.b16 %v92, %v91
    %vm101 = vcmask 523264
    %v103 = vsel %vm101, %v69, 0
    %v106 = vsel %vm101, %v70, 0
    %v109 = vsel %vm101, %v71, 0
    %v112 = vsel %vm101, %v72, 0
    %v115 = vsel %vm101, %v73, 0
    %v118 = vsel %vm101, %v74, 0
    %v121 = vsel %vm101, %v75, 0
    %v124 = vsel %vm101, %v76, 0
    %126 = vmatprep.subr.bf16.mxu0 0
    %127 = vmatpush1.bf16.msra.mxu0 %v93
    %128 = vmatprep.subr.bf16.mxu0 0
    %129 = vmatpush1.bf16.msra.mxu0 %v94
    %130 = vmatprep.subr.bf16.mxu0 0
    %131 = vmatpush1.bf16.msra.mxu0 %v95
    %132 = vmatprep.subr.bf16.mxu0 0
    %133 = vmatpush1.bf16.msra.mxu0 %v96
    %134 = vmatprep.subr.bf16.mxu0 0
    %135 = vmatpush1.bf16.msra.mxu0 0
    %136 = vmatprep.subr.bf16.mxu0 0
    %137 = vmatpush1.bf16.msra.mxu0 0
    %138 = vmatprep.subr.bf16.mxu0 0
    %139 = vmatpush1.bf16.msra.mxu0 0
    %140 = vmatprep.subr.bf16.mxu0 0
    %141 = vmatpush1.bf16.msra.mxu0 0
    %142 = vmatprep.subr.bf16.mxu0 0
    %143 = vmatpush1.bf16.msra.mxu0 0
    %144 = vmatprep.subr.bf16.mxu0 0
    %145 = vmatpush1.bf16.msra.mxu0 0
    %146 = vmatprep.subr.bf16.mxu0 0
    %147 = vmatpush1.bf16.msra.mxu0 0
    %148 = vmatprep.subr.bf16.mxu0 0
    %149 = vmatpush1.bf16.msra.mxu0 0
    %150 = vmatprep.subr.bf16.mxu0 0
    %151 = vmatpush1.bf16.msra.mxu0 0
    %152 = vmatprep.subr.bf16.mxu0 0
    %153 = vmatpush1.bf16.msra.mxu0 0
    %154 = vmatprep.subr.bf16.mxu0 0
    %155 = vmatpush1.bf16.msra.mxu0 0
    %156 = vmatprep.subr.bf16.mxu0 0
    %157 = vmatpush1.bf16.msra.mxu0 0
    %158 = vmatprep.mubr.bf16.mxu0 0
    %159 = vmatmul.mubr.bf16.gmra.mrb[0].mxu0 %v103
    %v160 = vpop.f32.mrb[0].mxu0
    %v161 = vadd.f32 0.0, %v160
    %v162 = vpop.f32.mrb[0].mxu0
    %v163 = vpop.f32.mrb[0].mxu0
    %v164 = vadd.f32 0.0, %v163
    %v165 = vpop.f32.mrb[0].mxu0
    %166 = vmatprep.mubr.bf16.mxu0 0
    %167 = vmatmul.mubr.bf16.gmra.mrb[0].mxu0 %v106
    %v168 = vpop.f32.mrb[0].mxu0
    %v169 = vadd.f32 0.0, %v168
    %v170 = vpop.f32.mrb[0].mxu0
    %v171 = vpop.f32.mrb[0].mxu0
    %v172 = vadd.f32 0.0, %v171
    %v173 = vpop.f32.mrb[0].mxu0
    %174 = vmatprep.mubr.bf16.mxu0 0
    %175 = vmatmul.mubr.bf16.gmra.mrb[0].mxu0 %v109
    %v176 = vpop.f32.mrb[0].mxu0
    %v177 = vadd.f32 0.0, %v176
    %v178 = vpop.f32.mrb[0].mxu0
    %v179 = vpop.f32.mrb[0].mxu0
    %v180 = vadd.f32 0.0, %v179
    %v181 = vpop.f32.mrb[0].mxu0
    %182 = vmatprep.mubr.bf16.mxu0 0
    %183 = vmatmul.mubr.bf16.gmra.mrb[0].mxu0 %v112
    %v184 = vpop.f32.mrb[0].mxu0
    %v185 = vadd.f32 0.0, %v184
    %v186 = vpop.f32.mrb[0].mxu0
    %v187 = vpop.f32.mrb[0].mxu0
    %v188 = vadd.f32 0.0, %v187
    %v189 = vpop.f32.mrb[0].mxu0
    %190 = vmatprep.mubr.bf16.mxu0 0
    %191 = vmatmul.mubr.bf16.gmra.mrb[0].mxu0 %v115
    %v192 = vpop.f32.mrb[0].mxu0
    %v193 = vadd.f32 0.0, %v192
    %v194 = vpop.f32.mrb[0].mxu0
    %v195 = vpop.f32.mrb[0].mxu0
    %v196 = vadd.f32 0.0, %v195
    %v197 = vpop.f32.mrb[0].mxu0
    %198 = vmatprep.mubr.bf16.mxu0 0
    %199 = vmatmul.mubr.bf16.gmra.mrb[0].mxu0 %v118
    %v200 = vpop.f32.mrb[0].mxu0
    %v201 = vadd.f32 0.0, %v200
    %v202 = vpop.f32.mrb[0].mxu0
    %v203 = vpop.f32.mrb[0].mxu0
    %v204 = vadd.f32 0.0, %v203
    %v205 = vpop.f32.mrb[0].mxu0
    %206 = vmatprep.mubr.bf16.mxu0 0
    %207 = vmatmul.mubr.bf16.gmra.mrb[0].mxu0 %v121
    %v208 = vpop.f32.mrb[0].mxu0
    %v209 = vadd.f32 0.0, %v208
    %v210 = vpop.f32.mrb[0].mxu0
    %v211 = vpop.f32.mrb[0].mxu0
    %v212 = vadd.f32 0.0, %v211
    %v213 = vpop.f32.mrb[0].mxu0
    %214 = vmatprep.mubr.bf16.mxu0 0
    %215 = vmatmul.mubr.bf16.gmra.mrb[0].mxu0 %v124
    %v216 = vpop.f32.mrb[0].mxu0
    %v217 = vadd.f32 0.0, %v216
    %v218 = vpop.f32.mrb[0].mxu0
    %v219 = vpop.f32.mrb[0].mxu0
    %v220 = vadd.f32 0.0, %v219
    %v221 = vpop.f32.mrb[0].mxu0
    %222 = vdwg.mxu0
    %vm223 = vcmp.gt.f32.partialorder %v161, 0.0
    %vm224 = vcmp.gt.f32.partialorder %v164, 0.0
    %vm225 = vcmp.gt.f32.partialorder %v169, 0.0
    %vm226 = vcmp.gt.f32.partialorder %v172, 0.0
    %vm227 = vcmp.gt.f32.partialorder %v177, 0.0
    %vm228 = vcmp.gt.f32.partialorder %v180, 0.0
    %vm229 = vcmp.gt.f32.partialorder %v185, 0.0
    %vm230 = vcmp.gt.f32.partialorder %v188, 0.0
    %vm231 = vcmp.gt.f32.partialorder %v193, 0.0
    %vm232 = vcmp.gt.f32.partialorder %v196, 0.0
    %vm233 = vcmp.gt.f32.partialorder %v201, 0.0
    %vm234 = vcmp.gt.f32.partialorder %v204, 0.0
    %vm235 = vcmp.gt.f32.partialorder %v209, 0.0
    %vm236 = vcmp.gt.f32.partialorder %v212, 0.0
    %vm237 = vcmp.gt.f32.partialorder %v217, 0.0
    %vm238 = vcmp.gt.f32.partialorder %v220, 0.0
    %v239 = vmul.f32 %v161, 0.2
    %v240 = vmul.f32 %v164, 0.2
    %v241 = vmul.f32 %v169, 0.2
    %v242 = vmul.f32 %v172, 0.2
    %v243 = vmul.f32 %v177, 0.2
    %v244 = vmul.f32 %v180, 0.2
    %v245 = vmul.f32 %v185, 0.2
    %v246 = vmul.f32 %v188, 0.2
    %v247 = vmul.f32 %v193, 0.2
    %v248 = vmul.f32 %v196, 0.2
    %v249 = vmul.f32 %v201, 0.2
    %v250 = vmul.f32 %v204, 0.2
    %v251 = vmul.f32 %v209, 0.2
    %v252 = vmul.f32 %v212, 0.2
    %v253 = vmul.f32 %v217, 0.2
    %v254 = vmul.f32 %v220, 0.2
    %v255 = vsel %vm223, %v161, %v239
    %v256 = vsel %vm224, %v164, %v240
    %v257 = vsel %vm225, %v169, %v241
    %v258 = vsel %vm226, %v172, %v242
    %v259 = vsel %vm227, %v177, %v243
    %v260 = vsel %vm228, %v180, %v244
    %v261 = vsel %vm229, %v185, %v245
    %v262 = vsel %vm230, %v188, %v246
    %v263 = vsel %vm231, %v193, %v247
    %v264 = vsel %vm232, %v196, %v248
    %v265 = vsel %vm233, %v201, %v249
    %v266 = vsel %vm234, %v204, %v250
    %v267 = vsel %vm235, %v209, %v251
    %v268 = vsel %vm236, %v212, %v252
    %v269 = vsel %vm237, %v217, %v253
    %v270 = vsel %vm238, %v220, %v254
    %v271 = vpack.c.bf16 %v256, %v255
    %v272 = vpack.c.bf16 %v258, %v257
    %v273 = vpack.c.bf16 %v260, %v259
    %v274 = vpack.c.bf16 %v262, %v261
    %v275 = vpack.c.bf16 %v264, %v263
    %v276 = vpack.c.bf16 %v266, %v265
    %v277 = vpack.c.bf16 %v268, %v267
    %v278 = vpack.c.bf16 %v270, %v269
    %v287 = vunpack.c.l.b16 %v271
    %v288 = vunpack.c.h.b16 %v271
    %v289 = vunpack.c.l.b16 %v272
    %v290 = vunpack.c.h.b16 %v272
    %v291 = vunpack.c.l.b16 %v273
    %v292 = vunpack.c.h.b16 %v273
    %v293 = vunpack.c.l.b16 %v274
    %v294 = vunpack.c.h.b16 %v274
    %v295 = vunpack.c.l.b16 %v275
    %v296 = vunpack.c.h.b16 %v275
    %v297 = vunpack.c.l.b16 %v276
    %v298 = vunpack.c.h.b16 %v276
    %v299 = vunpack.c.l.b16 %v277
    %v300 = vunpack.c.h.b16 %v277
    %v301 = vunpack.c.l.b16 %v278
    %v302 = vunpack.c.h.b16 %v278
    %v303 = vpack.c.b16 %v287, %v287
    %v304 = vpack.c.b16 %v288, %v288
    %v305 = vpack.c.b16 %v289, %v289
    %v306 = vpack.c.b16 %v290, %v290
    %v307 = vpack.c.b16 %v291, %v291
    %v308 = vpack.c.b16 %v292, %v292
    %v309 = vpack.c.b16 %v293, %v293
    %v310 = vpack.c.b16 %v294, %v294
    %v311 = vpack.c.b16 %v295, %v295
    %v312 = vpack.c.b16 %v296, %v296
    %v313 = vpack.c.b16 %v297, %v297
    %v314 = vpack.c.b16 %v298, %v298
    %v315 = vpack.c.b16 %v299, %v299
    %v316 = vpack.c.b16 %v300, %v300
    %v317 = vpack.c.b16 %v301, %v301
    %v318 = vpack.c.b16 %v302, %v302
    %335 = vst [vmem:[#allocation2] sm:$0xf] %v303
    %336 = vst [vmem:[#allocation2 + $0x4] sm:$0xf] %v304
    %337 = vst [vmem:[#allocation2 + $0x8] sm:$0xf] %v305
    %338 = vst [vmem:[#allocation2 + $0xc] sm:$0xf] %v306
    %339 = vst [vmem:[#allocation2 + $0x10] sm:$0xf] %v307
    %340 = vst [vmem:[#allocation2 + $0x14] sm:$0xf] %v308
    %341 = vst [vmem:[#allocation2 + $0x18] sm:$0xf] %v309
    %342 = vst [vmem:[#allocation2 + $0x1c] sm:$0xf] %v310
    %343 = vst [vmem:[#allocation2 + $0x20] sm:$0xf] %v311
    %344 = vst [vmem:[#allocation2 + $0x24] sm:$0xf] %v312
    %345 = vst [vmem:[#allocation2 + $0x28] sm:$0xf] %v313
    %346 = vst [vmem:[#allocation2 + $0x2c] sm:$0xf] %v314
    %347 = vst [vmem:[#allocation2 + $0x30] sm:$0xf] %v315
    %348 = vst [vmem:[#allocation2 + $0x34] sm:$0xf] %v316
    %349 = vst [vmem:[#allocation2 + $0x38] sm:$0xf] %v317
    %350 = vst [vmem:[#allocation2 + $0x3c] sm:$0xf] %v318
    // Predicated region
    $region10: #{tpu_custom_call.1} parent=1 // pred_check
      _
    $region11: #{tpu_custom_call.1} parent=1 // pred_check_branch
      %352 = sbr.rel (0) target = $region13
    $region12: #{tpu_custom_call.1} parent=1 // pred_region
      %s354 = ssub.s32 1024, 1024
      %355 = vsyncadd [#allocation3], %s354
      %s356 = sshll.u32 [#allocation2], 4
      %s357 = int_to_ptr.vmem [resolvable:$true] %s356
      %362 = dma.vmem_to_hbm [thread:$0]  %s357, 1024, %s2, [#allocation3], 64, 64, 4
    $region13: #{tpu_custom_call.1} parent=1 // pred_fallthru
      _
    // Predicated region
    $region14: #{tpu_custom_call.1} parent=1 // pred_check
      _
    $region15: #{tpu_custom_call.1} parent=1 // pred_check_branch
      %364 = sbr.rel (0) target = $region17
    $region16: #{tpu_custom_call.1} parent=1 // pred_region
      %365 = dma.done [#allocation3], 1024
    $region17: #{tpu_custom_call.1} parent=1 // pred_fallthru
      _
    %366 = vsyncpa [#allocation3], 1

</llo_original>
